<compile_context>
chip_gen: v7x
topology: tpu7x:2x2x1
jax: 0.10.0
libtpu: 0.0.40
codegen_flags: <defaults>
</compile_context>

<pallas_src>
import functools

import jax
import jax.numpy as jnp
from jax.experimental import pallas as pl
from jax.experimental.pallas import tpu as pltpu


def make_divisible(v, divisor=8, min_value=None):
    if min_value is None:
        min_value = divisor
    new_v = max(min_value, int(v + divisor / 2) // divisor * divisor)
    if new_v < 0.9 * v:
        new_v += divisor
    return new_v


def _hardswish(x):
    return x * jnp.clip(x + 3.0, 0.0, 6.0) * (1.0 / 6.0)


def _se_kernel(x_ref, w1t_ref, b1_ref, w2t_ref, b2_ref, o_ref, *, inv_hw):
    # x_ref / o_ref: (Nb, C, HW) in the native dtype.
    # Squeeze: global average pool; accumulate in f32 without materializing an
    # f32 copy of the tile.
    pooled = jnp.sum(x_ref[...], axis=2, dtype=jnp.float32) * inv_hw      # (Nb, C)

    # fc1 (1x1 conv, C -> Csq) + ReLU, batched over the Nb images in the block.
    s1 = jnp.dot(pooled, w1t_ref[...], preferred_element_type=jnp.float32)
    s1 = jnp.maximum(s1 + b1_ref[...], 0.0)                               # (Nb, Csq)

    # fc2 (1x1 conv, Csq -> C), no activation.
    s2 = jnp.dot(s1, w2t_ref[...], preferred_element_type=jnp.float32)
    s2 = s2 + b2_ref[...]                                                 # (Nb, C)

    # scale_fn = hswish, then excite. Multiply in the native dtype so the full
    # (Nb, C, HW) tile never lives in vregs as f32.
    scale = _hardswish(s2).astype(o_ref.dtype)[:, :, None]                # (Nb, C, 1)
    o_ref[...] = x_ref[...] * scale


def _vmem_capacity_bytes():
    try:
        cap = getattr(pltpu.get_tpu_info(), "vmem_capacity_bytes", None)
        if cap:
            return int(cap)
    except Exception:
        pass
    return 64 << 20  # conservative fallback (v7x per-TensorCore VMEM)


@jax.jit
def squeeze_excitation(x, w1, b1, w2, b2):
    """x: (N, C, H, W); w1: (Csq, C); b1: (Csq,) or (Csq,1); w2: (C, Csq); b2: (C,) or (C,1)."""
    N, C, H, W = x.shape
    Csq = w1.shape[0]
    HW = H * W

    x_flat = x.reshape(N, C, HW)                # minor-dim merge: no data movement

    # ---- Block sizing, aware of this generation's VMEM capacity. ------------
    itemsize = jnp.dtype(x.dtype).itemsize
    per_image_bytes = C * HW * itemsize
    weight_bytes = 4 * (2 * C * Csq + Csq + C)             # f32 weights + biases
    slack = 4 << 20                                        # Mosaic internal scratch

    vmem_cap = _vmem_capacity_bytes()
    vmem_budget = min(int(vmem_cap * 0.75), vmem_cap - (8 << 20))

    # x + out, double-buffered -> 4 block-sized buffers resident at once.
    max_block_bytes = max((vmem_budget - 2 * weight_bytes - slack) // 4,
                          per_image_bytes)
    target_block_bytes = 8 * 1024 * 1024        # amortize ~0.35us per-step overhead
    Nb = int(max(1, min(N, min(target_block_bytes, max_block_bytes)
                        // max(per_image_bytes, 1))))
    # v7x has 2 TensorCores: keep the "parallel" grid axis at >= 2 steps.
    Nb = min(Nb, max(1, N // 2))
    n_steps = pl.cdiv(N, Nb)                    # ragged last block is fine

    # If even one image does not fit double-buffered, fall back to single
    # buffering on the streamed blocks (DMA exposed, but it still streams).
    # TODO(synk): an HW-tiled two-phase (pool pass + excite pass) path would
    # preserve double-buffering for extremely large per-image footprints.
    double_buffer = (4 * Nb * per_image_bytes + 2 * weight_bytes + slack) <= vmem_budget
    stream_kwargs = {} if double_buffer else {"pipeline_mode": pl.Buffered(1)}

    bufs = 2 if double_buffer else 1
    est = 2 * bufs * Nb * per_image_bytes + 2 * weight_bytes + slack + (4 << 20)
    vmem_limit = int(min(vmem_budget, max(est, 32 << 20)))

    # Pre-transpose / pre-cast weights & biases once (no per-step casts).
    w1t = w1.T.astype(jnp.float32)                         # (C, Csq)
    w2t = w2.T.astype(jnp.float32)                         # (Csq, C)
    b1r = b1.reshape(1, Csq).astype(jnp.float32)
    b2r = b2.reshape(1, C).astype(jnp.float32)

    kernel = functools.partial(_se_kernel, inv_hw=1.0 / float(HW))

    out_flat = pl.pallas_call(
        kernel,
        out_shape=jax.ShapeDtypeStruct((N, C, HW), x.dtype),
        grid_spec=pltpu.PrefetchScalarGridSpec(
            num_scalar_prefetch=0,
            grid=(n_steps,),
            in_specs=[
                pl.BlockSpec((Nb, C, HW), lambda n: (n, 0, 0), **stream_kwargs),
                pl.BlockSpec((C, Csq), lambda n: (0, 0)),
                pl.BlockSpec((1, Csq), lambda n: (0, 0)),
                pl.BlockSpec((Csq, C), lambda n: (0, 0)),
                pl.BlockSpec((1, C), lambda n: (0, 0)),
            ],
            out_specs=pl.BlockSpec((Nb, C, HW), lambda n: (n, 0, 0), **stream_kwargs),
        ),
        compiler_params=pltpu.CompilerParams(
            dimension_semantics=("parallel",),
            vmem_limit_bytes=vmem_limit),
    )(x_flat, w1t, b1r, w2t, b2r)

    return out_flat.reshape(N, C, H, W)


def _reference(x, w1, b1, w2, b2):
    xf = x.astype(jnp.float32)
    pooled = jnp.mean(xf, axis=(2, 3))                       # (N, C)
    s1 = jnp.maximum(pooled @ w1.T + b1.reshape(-1), 0.0)    # (N, Csq)
    s2 = s1 @ w2.T + b2.reshape(-1)                          # (N, C)
    scale = _hardswish(s2)[:, :, None, None]                 # (N, C, 1, 1)
    return (xf * scale).astype(x.dtype)


if __name__ == "__main__":
    N, C, H, W = 2, 4, 16, 16
    squeeze_factor = 4
    Csq = max(make_divisible(C // squeeze_factor, 8), 32)    # = 32 for C=4

    key = jax.random.PRNGKey(0)
    kx, k1, k2, k3, k4 = jax.random.split(key, 5)

    x = jax.random.normal(kx, (N, C, H, W), dtype=jnp.float32)
    # fc1: 1x1 conv weight (Csq, C, 1, 1) -> (Csq, C), bias (Csq,)
    w1 = jax.random.normal(k1, (Csq, C), dtype=jnp.float32) * 0.1
    b1 = jax.random.normal(k2, (Csq,), dtype=jnp.float32) * 0.1
    # fc2: 1x1 conv weight (C, Csq, 1, 1) -> (C, Csq), bias (C,)
    w2 = jax.random.normal(k3, (C, Csq), dtype=jnp.float32) * 0.1
    b2 = jax.random.normal(k4, (C,), dtype=jnp.float32) * 0.1

    out = squeeze_excitation(x, w1, b1, w2, b2)
    out = jax.block_until_ready(out)

    ref = _reference(x, w1, b1, w2, b2)
    assert out.shape == (N, C, H, W)
    assert jnp.allclose(out, ref, atol=1e-5, rtol=1e-5), "mismatch vs reference"

    print("KERNEL_OK")
</pallas_src>

<mosaic_0001>
module attributes {stable_mosaic.version = 11 : i64} {
  func.func @_se_kernel(%arg0: i32, %arg1: memref<1x4x256xf32, #tpu.memory_space<vmem>>, %arg2: memref<4x32xf32, #tpu.memory_space<vmem>>, %arg3: memref<1x32xf32, #tpu.memory_space<vmem>>, %arg4: memref<32x4xf32, #tpu.memory_space<vmem>>, %arg5: memref<1x4xf32, #tpu.memory_space<vmem>>, %arg6: memref<1x4x256xf32, #tpu.memory_space<vmem>>) attributes {dimension_semantics = [#tpu.dimension_semantics<parallel>], iteration_bounds = array<i64: 2>, scalar_prefetch = 0 : i64, scratch_operands = 0 : i64, tpu.core_type = #tpu.core_type<tc>, window_params = [{transform_indices = @transform_0, window_bounds = array<i64: 1, 4, 256>}, {pipeline_mode = #tpu.pipeline_mode<synchronous>, transform_indices = @transform_1, window_bounds = array<i64: 4, 32>}, {pipeline_mode = #tpu.pipeline_mode<synchronous>, transform_indices = @transform_2, window_bounds = array<i64: 1, 32>}, {pipeline_mode = #tpu.pipeline_mode<synchronous>, transform_indices = @transform_3, window_bounds = array<i64: 32, 4>}, {pipeline_mode = #tpu.pipeline_mode<synchronous>, transform_indices = @transform_4, window_bounds = array<i64: 1, 4>}, {transform_indices = @transform_5, window_bounds = array<i64: 1, 4, 256>}]} {
    %c0 = arith.constant 0 : index
    %c0_0 = arith.constant 0 : index
    %c0_1 = arith.constant 0 : index
    %0 = vector.load %arg1[%c0, %c0_0, %c0_1] : memref<1x4x256xf32, #tpu.memory_space<vmem>>, vector<1x4x256xf32>
    %cst = arith.constant dense<0.000000e+00> : vector<1x4xf32>
    %1 = vector.multi_reduction <add>, %0, %cst [2] : vector<1x4x256xf32> to vector<1x4xf32>
    %cst_2 = arith.constant 3.906250e-03 : f32
    %2 = vector.broadcast %cst_2 : f32 to vector<1x4xf32>
    %3 = arith.mulf %1, %2 : vector<1x4xf32>
    %c0_3 = arith.constant 0 : index
    %c0_4 = arith.constant 0 : index
    %4 = vector.load %arg2[%c0_3, %c0_4] : memref<4x32xf32, #tpu.memory_space<vmem>>, vector<4x32xf32>
    %cst_5 = arith.constant dense<0.000000e+00> : vector<1x32xf32>
    %5 = tpu.matmul %3, %4, %cst_5 {dimension_numbers = #tpu.dot_dimension_numbers<[1], [0], [0], [1], [0, 0, 1, 1], [], []>} : vector<1x4xf32>, vector<4x32xf32>, vector<1x32xf32> -> vector<1x32xf32>
    %c0_6 = arith.constant 0 : index
    %c0_7 = arith.constant 0 : index
    %6 = vector.load %arg3[%c0_6, %c0_7] : memref<1x32xf32, #tpu.memory_space<vmem>>, vector<1x32xf32>
    %7 = arith.addf %5, %6 : vector<1x32xf32>
    %cst_8 = arith.constant 0.000000e+00 : f32
    %8 = vector.broadcast %cst_8 : f32 to vector<1x32xf32>
    %9 = arith.maximumf %7, %8 : vector<1x32xf32>
    %c0_9 = arith.constant 0 : index
    %c0_10 = arith.constant 0 : index
    %10 = vector.load %arg4[%c0_9, %c0_10] : memref<32x4xf32, #tpu.memory_space<vmem>>, vector<32x4xf32>
    %cst_11 = arith.constant dense<0.000000e+00> : vector<1x4xf32>
    %11 = tpu.matmul %9, %10, %cst_11 {dimension_numbers = #tpu.dot_dimension_numbers<[1], [0], [0], [1], [0, 0, 1, 1], [], []>} : vector<1x32xf32>, vector<32x4xf32>, vector<1x4xf32> -> vector<1x4xf32>
    %c0_12 = arith.constant 0 : index
    %c0_13 = arith.constant 0 : index
    %12 = vector.load %arg5[%c0_12, %c0_13] : memref<1x4xf32, #tpu.memory_space<vmem>>, vector<1x4xf32>
    %13 = arith.addf %11, %12 : vector<1x4xf32>
    %cst_14 = arith.constant 3.000000e+00 : f32
    %14 = vector.broadcast %cst_14 : f32 to vector<1x4xf32>
    %15 = arith.addf %13, %14 : vector<1x4xf32>
    %cst_15 = arith.constant 0.000000e+00 : f32
    %cst_16 = arith.constant 6.000000e+00 : f32
    %16 = vector.broadcast %cst_15 : f32 to vector<1x4xf32>
    %17 = arith.maximumf %16, %15 : vector<1x4xf32>
    %18 = vector.broadcast %cst_16 : f32 to vector<1x4xf32>
    %19 = arith.minimumf %18, %17 : vector<1x4xf32>
    %20 = arith.mulf %13, %19 : vector<1x4xf32>
    %cst_17 = arith.constant 0.166666672 : f32
    %21 = vector.broadcast %cst_17 : f32 to vector<1x4xf32>
    %22 = arith.mulf %20, %21 : vector<1x4xf32>
    %23 = vector.shape_cast %22 : vector<1x4xf32> to vector<1x4x1xf32>
    %c0_18 = arith.constant 0 : index
    %c0_19 = arith.constant 0 : index
    %c0_20 = arith.constant 0 : index
    %24 = vector.load %arg1[%c0_18, %c0_19, %c0_20] : memref<1x4x256xf32, #tpu.memory_space<vmem>>, vector<1x4x256xf32>
    %25 = vector.broadcast %23 : vector<1x4x1xf32> to vector<1x4x256xf32>
    %26 = arith.mulf %24, %25 : vector<1x4x256xf32>
    %c0_21 = arith.constant 0 : index
    %c0_22 = arith.constant 0 : index
    %c0_23 = arith.constant 0 : index
    %27 = vector.load %arg6[%c0_21, %c0_22, %c0_23] : memref<1x4x256xf32, #tpu.memory_space<vmem>>, vector<1x4x256xf32>
    tpu.vector_store %arg6[%c0_21, %c0_22, %c0_23], %26 {strides = array<i32>} : memref<1x4x256xf32, #tpu.memory_space<vmem>>, vector<1x4x256xf32>,
    return
  }
  func.func @transform_0(%arg0: i32) -> (i32, i32, i32) {
    %c0_i32 = arith.constant 0 : i32
    %c0_i32_0 = arith.constant 0 : i32
    %c0_i32_1 = arith.constant 0 : i32
    return %arg0, %c0_i32, %c0_i32_0 : i32, i32, i32
  }
  func.func @transform_1(%arg0: i32) -> (i32, i32) {
    %c0_i32 = arith.constant 0 : i32
    %c0_i32_0 = arith.constant 0 : i32
    %c0_i32_1 = arith.constant 0 : i32
    return %c0_i32, %c0_i32_0 : i32, i32
  }
  func.func @transform_2(%arg0: i32) -> (i32, i32) {
    %c0_i32 = arith.constant 0 : i32
    %c0_i32_0 = arith.constant 0 : i32
    %c0_i32_1 = arith.constant 0 : i32
    return %c0_i32, %c0_i32_0 : i32, i32
  }
  func.func @transform_3(%arg0: i32) -> (i32, i32) {
    %c0_i32 = arith.constant 0 : i32
    %c0_i32_0 = arith.constant 0 : i32
    %c0_i32_1 = arith.constant 0 : i32
    return %c0_i32, %c0_i32_0 : i32, i32
  }
  func.func @transform_4(%arg0: i32) -> (i32, i32) {
    %c0_i32 = arith.constant 0 : i32
    %c0_i32_0 = arith.constant 0 : i32
    %c0_i32_1 = arith.constant 0 : i32
    return %c0_i32, %c0_i32_0 : i32, i32
  }
  func.func @transform_5(%arg0: i32) -> (i32, i32, i32) {
    %c0_i32 = arith.constant 0 : i32
    %c0_i32_0 = arith.constant 0 : i32
    %c0_i32_1 = arith.constant 0 : i32
    return %arg0, %c0_i32, %c0_i32_0 : i32, i32, i32
  }
}

</mosaic_0001>

<llo_original>
// kernel: squeeze_excitation.1
$region0: #{squeeze_excitation.1}
  #allocation0 [shape = 'u32[]', space=smem, size = 0x4, offset = 0x4, fixed_abs, tag = 'smem constant byte address 0x4 - core index']
  #allocation1 [shape = 'u32[144,128]{1,0:T(1,128)}', space=vmem, size = 0x12000, scoped, tag = 'internal scratch']
  %s0 = inlined_call_operand.vmem [shape: f32[2,4,256], index: 0, kind: input, shape index: {}]
  %s1 = inlined_call_operand.vmem [shape: f32[4,32], index: 1, kind: input, shape index: {}]
  %s2 = inlined_call_operand.vmem [shape: f32[1,32], index: 2, kind: input, shape index: {}]
  %s3 = inlined_call_operand.vmem [shape: f32[32,4], index: 3, kind: input, shape index: {}]
  %s4 = inlined_call_operand.vmem [shape: f32[1,4], index: 4, kind: input, shape index: {}]
  %s5 = inlined_call_operand.vmem [shape: f32[2,4,256], index: 5, kind: output, shape index: {}]
  %s6 = sld [smem:[#allocation0]]
  $region53: #{squeeze_excitation.1} parent=0
    _
  %s8 = ssub.s32 1, %s6
  %s9 = scalar_select 0, %s8, %s6
  loop: start=0, step=1, limit=4
  $region2: #{squeeze_excitation.1} parent=0 // loop_pre_header
    _
  $region3: #{squeeze_excitation.1} parent=0 // loop_header
    %s11 = sphi 0, %s15
    %p12 = scmp.ge.s32.totalorder %s11, 4
    %s21 = sphi 0, %s23
    %s24 = sphi 0, %s21
    %s25 = sphi 0, %s24
    %s41 = sphi 0, %s25
    %s45 = sphi 0, %s45
    %s47 = sphi 0, %s45
    %s48 = sphi 0, %s47
    %s62 = sphi 0, %s48
    %s66 = sphi 0, %s66
    %s68 = sphi 0, %s66
    %s69 = sphi 0, %s68
    %s83 = sphi 0, %s69
    %s87 = sphi 0, %s87
    %s89 = sphi 0, %s87
    %s90 = sphi 0, %s89
    %s104 = sphi 0, %s90
    %s108 = sphi 0, %s108
    %s110 = sphi 0, %s108
    %s111 = sphi 0, %s110
    %s125 = sphi 0, %s111
    %s131 = sphi 0, %s133
    %s134 = sphi 0, %s131
    %s135 = sphi 0, %s134
    %s151 = sphi 0, %s135
  $region4: #{squeeze_excitation.1} parent=0 // loop_header_branch
    %14 = sbr.rel (%p12) target = $region8
  $region5: #{squeeze_excitation.1} parent=0 // loop_body
    %s16 = ssub.s32 %s11, 1
    %s17 = ssub.s32 %s11, 2
    %s18 = sadd.s32 %s11, 1
    %s19 = ssub.s32 %s11, %s18
    %p20 = scmp.eq.s32.totalorder %s19, 0
    %s22 = sadd.s32 %s21, 1
    %s23 = scalar_select %p20, %s21, %s22
    %p26 = pneg %p20
    %p27 = scmp.eq.s32.totalorder %s11, 1
    %p28 = por %p26, %p27
    %p29 = scmp.ne.s32.totalorder %s21, %s24
    %p30 = scmp.eq.s32.totalorder %s11, 0
    %p31 = por %p29, %p30
    %p32 = scmp.ne.s32.totalorder %s21, %s24
    %p33 = scmp.eq.s32.totalorder %s16, 1
    %p34 = por %p32, %p33
    %p35 = scmp.ne.s32.totalorder %s24, %s25
    %p36 = scmp.eq.s32.totalorder %s16, 0
    %p37 = por %p35, %p36
    %p38 = scmp.ne.s32.totalorder %s24, %s25
    %p39 = scmp.eq.s32.totalorder %s17, 1
    %p40 = por %p38, %p39
    %p42 = scmp.ne.s32.totalorder %s25, %s41
    %p43 = scmp.eq.s32.totalorder %s17, 0
    %p44 = por %p42, %p43
    %s46 = sadd.s32 %s45, 1
    %p49 = scmp.eq.s32.totalorder %s11, 1
    %p50 = scmp.ne.s32.totalorder %s45, %s47
    %p51 = scmp.eq.s32.totalorder %s11, 0
    %p52 = por %p50, %p51
    %p53 = scmp.ne.s32.totalorder %s45, %s47
    %p54 = scmp.eq.s32.totalorder %s16, 1
    %p55 = por %p53, %p54
    %p56 = scmp.ne.s32.totalorder %s47, %s48
    %p57 = scmp.eq.s32.totalorder %s16, 0
    %p58 = por %p56, %p57
    %p59 = scmp.ne.s32.totalorder %s47, %s48
    %p60 = scmp.eq.s32.totalorder %s17, 1
    %p61 = por %p59, %p60
    %p63 = scmp.ne.s32.totalorder %s48, %s62
    %p64 = scmp.eq.s32.totalorder %s17, 0
    %p65 = por %p63, %p64
    %s67 = sadd.s32 %s66, 1
    %p70 = scmp.eq.s32.totalorder %s11, 1
    %p71 = scmp.ne.s32.totalorder %s66, %s68
    %p72 = scmp.eq.s32.totalorder %s11, 0
    %p73 = por %p71, %p72
    %p74 = scmp.ne.s32.totalorder %s66, %s68
    %p75 = scmp.eq.s32.totalorder %s16, 1
    %p76 = por %p74, %p75
    %p77 = scmp.ne.s32.totalorder %s68, %s69
    %p78 = scmp.eq.s32.totalorder %s16, 0
    %p79 = por %p77, %p78
    %p80 = scmp.ne.s32.totalorder %s68, %s69
    %p81 = scmp.eq.s32.totalorder %s17, 1
    %p82 = por %p80, %p81
    %p84 = scmp.ne.s32.totalorder %s69, %s83
    %p85 = scmp.eq.s32.totalorder %s17, 0
    %p86 = por %p84, %p85
    %s88 = sadd.s32 %s87, 1
    %p91 = scmp.eq.s32.totalorder %s11, 1
    %p92 = scmp.ne.s32.totalorder %s87, %s89
    %p93 = scmp.eq.s32.totalorder %s11, 0
    %p94 = por %p92, %p93
    %p95 = scmp.ne.s32.totalorder %s87, %s89
    %p96 = scmp.eq.s32.totalorder %s16, 1
    %p97 = por %p95, %p96
    %p98 = scmp.ne.s32.totalorder %s89, %s90
    %p99 = scmp.eq.s32.totalorder %s16, 0
    %p100 = por %p98, %p99
    %p101 = scmp.ne.s32.totalorder %s89, %s90
    %p102 = scmp.eq.s32.totalorder %s17, 1
    %p103 = por %p101, %p102
    %p105 = scmp.ne.s32.totalorder %s90, %s104
    %p106 = scmp.eq.s32.totalorder %s17, 0
    %p107 = por %p105, %p106
    %s109 = sadd.s32 %s108, 1
    %p112 = scmp.eq.s32.totalorder %s11, 1
    %p113 = scmp.ne.s32.totalorder %s108, %s110
    %p114 = scmp.eq.s32.totalorder %s11, 0
    %p115 = por %p113, %p114
    %p116 = scmp.ne.s32.totalorder %s108, %s110
    %p117 = scmp.eq.s32.totalorder %s16, 1
    %p118 = por %p116, %p117
    %p119 = scmp.ne.s32.totalorder %s110, %s111
    %p120 = scmp.eq.s32.totalorder %s16, 0
    %p121 = por %p119, %p120
    %p122 = scmp.ne.s32.totalorder %s110, %s111
    %p123 = scmp.eq.s32.totalorder %s17, 1
    %p124 = por %p122, %p123
    %p126 = scmp.ne.s32.totalorder %s111, %s125
    %p127 = scmp.eq.s32.totalorder %s17, 0
    %p128 = por %p126, %p127
    %s129 = ssub.s32 %s11, %s18
    %p130 = scmp.eq.s32.totalorder %s129, 0
    %s132 = sadd.s32 %s131, 1
    %s133 = scalar_select %p130, %s131, %s132
    %p136 = pneg %p130
    %p137 = scmp.eq.s32.totalorder %s11, 1
    %p138 = por %p136, %p137
    %p139 = scmp.ne.s32.totalorder %s131, %s134
    %p140 = scmp.eq.s32.totalorder %s11, 0
    %p141 = por %p139, %p140
    %p142 = scmp.ne.s32.totalorder %s131, %s134
    %p143 = scmp.eq.s32.totalorder %s16, 1
    %p144 = por %p142, %p143
    %p145 = scmp.ne.s32.totalorder %s134, %s135
    %p146 = scmp.eq.s32.totalorder %s16, 0
    %p147 = por %p145, %p146
    %p148 = scmp.ne.s32.totalorder %s134, %s135
    %p149 = scmp.eq.s32.totalorder %s17, 1
    %p150 = por %p148, %p149
    %p152 = scmp.ne.s32.totalorder %s135, %s151
    %p153 = scmp.eq.s32.totalorder %s17, 0
    %p154 = por %p152, %p153
    %p155 = scmp.le.s32.totalorder 1, %s11
    %p156 = scmp.lt.s32.totalorder %s11, 3
    %p157 = pnand %p155, %p156
    %p158 = pneg %p157
    // Predicated region
    $region9: #{squeeze_excitation.1} parent=5 // pred_check
      _
    $region10: #{squeeze_excitation.1} parent=5 // pred_check_branch
      %160 = sbr.rel (%p157) target = $region12
    $region11: #{squeeze_excitation.1} parent=5 // pred_region
      %s161 = ssub.s32 %s11, 1
      // Predicated region
      $region13: #{squeeze_excitation.1} parent=11 // pred_check
        %p162 = pneg %p58
      $region14: #{squeeze_excitation.1} parent=11 // pred_check_branch
        %164 = sbr.rel (%p162) target = $region16
      $region15: #{squeeze_excitation.1} parent=11 // pred_region
        _
      $region16: #{squeeze_excitation.1} parent=11 // pred_fallthru
        _
      // Predicated region
      $region17: #{squeeze_excitation.1} parent=11 // pred_check
        %p165 = pneg %p79
      $region18: #{squeeze_excitation.1} parent=11 // pred_check_branch
        %167 = sbr.rel (%p165) target = $region20
      $region19: #{squeeze_excitation.1} parent=11 // pred_region
        _
      $region20: #{squeeze_excitation.1} parent=11 // pred_fallthru
        _
      // Predicated region
      $region21: #{squeeze_excitation.1} parent=11 // pred_check
        %p168 = pneg %p100
      $region22: #{squeeze_excitation.1} parent=11 // pred_check_branch
        %170 = sbr.rel (%p168) target = $region24
      $region23: #{squeeze_excitation.1} parent=11 // pred_region
        _
      $region24: #{squeeze_excitation.1} parent=11 // pred_fallthru
        _
      // Predicated region
      $region25: #{squeeze_excitation.1} parent=11 // pred_check
        %p171 = pneg %p121
      $region26: #{squeeze_excitation.1} parent=11 // pred_check_branch
        %173 = sbr.rel (%p171) target = $region28
      $region27: #{squeeze_excitation.1} parent=11 // pred_region
        _
      $region28: #{squeeze_excitation.1} parent=11 // pred_fallthru
        _
    $region12: #{squeeze_excitation.1} parent=5 // pred_fallthru
      _
    %p174 = scmp.lt.s32.totalorder %s11, 2
    // Predicated region
    $region29: #{squeeze_excitation.1} parent=5 // pred_check
      %p175 = pneg %p174
    $region30: #{squeeze_excitation.1} parent=5 // pred_check_branch
      %177 = sbr.rel (%p175) target = $region32
    $region31: #{squeeze_excitation.1} parent=5 // pred_region
      // Predicated region
      $region33: #{squeeze_excitation.1} parent=31 // pred_check
        %p178 = pneg %p31
      $region34: #{squeeze_excitation.1} parent=31 // pred_check_branch
        %180 = sbr.rel (%p178) target = $region36
      $region35: #{squeeze_excitation.1} parent=31 // pred_region
        %p181 = scmp.lt.s32.totalorder %s11, 1
        %s182 = scalar_select %p181, %s11, 1
        %s183 = smul.addr %s182, 2
        %s184 = smul.addr %s183, 4
        %s185 = scalar_lea.vmem %s0, %s184
      $region36: #{squeeze_excitation.1} parent=31 // pred_fallthru
        _
    $region32: #{squeeze_excitation.1} parent=5 // pred_fallthru
      _
    %p186 = scmp.le.s32.totalorder 1, %s11
    %p187 = scmp.lt.s32.totalorder %s11, 3
    %p188 = pnand %p186, %p187
    %p189 = pneg %p188
    // Predicated region
    $region37: #{squeeze_excitation.1} parent=5 // pred_check
      _
    $region38: #{squeeze_excitation.1} parent=5 // pred_check_branch
      %191 = sbr.rel (%p188) target = $region40
    $region39: #{squeeze_excitation.1} parent=5 // pred_region
      %s192 = ssub.s32 %s11, 1
      %p193 = scmp.lt.s32.totalorder %s16, 1
      %s194 = scalar_select %p193, %s16, 1
      %s195 = smul.addr %s194, 2
      %s196 = smul.addr %s195, 4
      %s197 = scalar_lea.vmem %s0, %s196
      %p198 = pneg %p37
      %p199 = pneg %p34
      %p200 = pneg %p58
      %p201 = pneg %p55
      %p202 = pneg %p79
      %p203 = pneg %p76
      %p204 = pneg %p100
      %p205 = pneg %p97
      %p206 = pneg %p121
      %p207 = pneg %p118
      %p208 = pneg %p147
      %p209 = pneg %p144
      %p210 = scmp.lt.s32.totalorder %s16, 1
      %s211 = scalar_select %p210, %s16, 1
      %s212 = smul.addr %s211, 2
      %s213 = smul.addr %s212, 4
      %s214 = scalar_lea.vmem %s5, %s213
      %p215 = scmp.lt.s32.totalorder %s16, 1
      %s216 = scalar_select %p215, %s16, 1
      %s217 = smul.addr %s216, 2
      %s218 = smul.addr %s217, 4
      %s219 = scalar_lea.vmem %s0, %s218
      %p220 = scmp.lt.s32.totalorder %s16, 1
      %s221 = scalar_select %p220, %s16, 1
      %s222 = smul.addr %s221, 2
      %s223 = smul.addr %s222, 4
      %s224 = scalar_lea.vmem %s5, %s223
      %v225 = vld [vmem:[%s219] sm:$0xff]
      %v227 = vcombine.high %v225, %v225
      %vm229 = vcmask 1043456
      %v230 = vsel %vm229, %v225, 0.0
      %v231 = vsel %vm229, %v227, 0.0
      %v232 = vadd.f32 %v230, %v231
      %233 = vadd.xlane.f32.xlu0 %v232
      %v234 = vpop.xlane.xlu0 %233
      %v235 = vmul.f32 %v234, 0.00390625
      %v236 = vld [vmem:[%s1] sm:$0xf]
      %v237 = vld [vmem:[%s2] sm:$0x1]
      %v239 = vlaneseq
      %v240 = vand.u32 %v239, 127
      %v241 = vlaneseq
      %v242 = vshrl.u32 %v241, 7
      %v243 = vsub.s32 %v240, %v242
      %v244 = vrot.slane %v235, %v243
      %vm245 = vcmask 31744
      %v246 = vsel %vm245, %v244, 0
      %v249 = vsel %vm229, %v236, 0
      %251 = vmatprep.subr.mxu0 0.0
      %252 = vmatpush1.msra.mxu0 %v249
      %253 = vmatprep.subr.mxu0 0.0
      %254 = vmatpush1.msra.mxu0 0.0
      %255 = vmatprep.subr.mxu0 0.0
      %256 = vmatpush1.msra.mxu0 0.0
      %257 = vmatprep.subr.mxu0 0.0
      %258 = vmatpush1.msra.mxu0 0.0
      %259 = vmatprep.subr.mxu0 0.0
      %260 = vmatpush1.msra.mxu0 0.0
      %261 = vmatprep.subr.mxu0 0.0
      %262 = vmatpush1.msra.mxu0 0.0
      %263 = vmatprep.subr.mxu0 0.0
      %264 = vmatpush1.msra.mxu0 0.0
      %265 = vmatprep.subr.mxu0 0.0
      %266 = vmatpush1.msra.mxu0 0.0
      %267 = vmatprep.subr.mxu0 0.0
      %268 = vmatpush1.msra.mxu0 0.0
      %269 = vmatprep.subr.mxu0 0.0
      %270 = vmatpush1.msra.mxu0 0.0
      %271 = vmatprep.subr.mxu0 0.0
      %272 = vmatpush1.msra.mxu0 0.0
      %273 = vmatprep.subr.mxu0 0.0
      %274 = vmatpush1.msra.mxu0 0.0
      %275 = vmatprep.subr.mxu0 0.0
      %276 = vmatpush1.msra.mxu0 0.0
      %277 = vmatprep.subr.mxu0 0.0
      %278 = vmatpush1.msra.mxu0 0.0
      %279 = vmatprep.subr.mxu0 0.0
      %280 = vmatpush1.msra.mxu0 0.0
      %281 = vmatprep.subr.mxu0 0.0
      %282 = vmatpush1.msra.mxu0 0.0
      %283 = vmatprep.subr.mxu0 0.0
      %284 = vmatpush1.msra.mxu0 0.0
      %285 = vmatprep.subr.mxu0 0.0
      %286 = vmatpush1.msra.mxu0 0.0
      %287 = vmatprep.subr.mxu0 0.0
      %288 = vmatpush1.msra.mxu0 0.0
      %289 = vmatprep.subr.mxu0 0.0
      %290 = vmatpush1.msra.mxu0 0.0
      %291 = vmatprep.subr.mxu0 0.0
      %292 = vmatpush1.msra.mxu0 0.0
      %293 = vmatprep.subr.mxu0 0.0
      %294 = vmatpush1.msra.mxu0 0.0
      %295 = vmatprep.subr.mxu0 0.0
      %296 = vmatpush1.msra.mxu0 0.0
      %297 = vmatprep.subr.mxu0 0.0
      %298 = vmatpush1.msra.mxu0 0.0
      %299 = vmatprep.subr.mxu0 0.0
      %300 = vmatpush1.msra.mxu0 0.0
      %301 = vmatprep.subr.mxu0 0.0
      %302 = vmatpush1.msra.mxu0 0.0
      %303 = vmatprep.subr.mxu0 0.0
      %304 = vmatpush1.msra.mxu0 0.0
      %305 = vmatprep.subr.mxu0 0.0
      %306 = vmatpush1.msra.mxu0 0.0
      %307 = vmatprep.subr.mxu0 0.0
      %308 = vmatpush1.msra.mxu0 0.0
      %309 = vmatprep.subr.mxu0 0.0
      %310 = vmatpush1.msra.mxu0 0.0
      %311 = vmatprep.subr.mxu0 0.0
      %312 = vmatpush1.msra.mxu0 0.0
      %313 = vmatprep.subr.mxu0 0.0
      %314 = vmatpush1.msra.mxu0 0.0
      %315 = vmatprep.mubr.f32.mxu0 0.0
      %316 = vmatmul.mubr.f32.gmra.mrb[0].mxu0 %v246
      %v317 = vpop.f32.mrb[0].mxu0
      %v318 = vadd.f32 %v237, %v317
      %v319 = vpop.f32.mrb[0].mxu0
      %320 = vdwg.mxu0
      %v321 = vmax.f32 %v318, 0.0
      %v322 = vld [vmem:[%s3] sm:$0xff]
      %v323 = vld [vmem:[%s3 + $0x8] sm:$0xff]
      %v324 = vld [vmem:[%s3 + $0x10] sm:$0xff]
      %v325 = vld [vmem:[%s3 + $0x18] sm:$0xff]
      %v326 = vld [vmem:[%s4] sm:$0x1]
      %vm327 = vcmask 261120
      %v329 = vsel %vm327, %v321, 0
      %331 = vmatprep.subr.mxu0 0.0
      %332 = vmatpush1.msra.mxu0 %v322
      %333 = vmatprep.subr.mxu0 0.0
      %334 = vmatpush1.msra.mxu0 %v323
      %335 = vmatprep.subr.mxu0 0.0
      %336 = vmatpush1.msra.mxu0 %v324
      %337 = vmatprep.subr.mxu0 0.0
      %338 = vmatpush1.msra.mxu0 %v325
      %339 = vmatprep.subr.mxu0 0.0
      %340 = vmatpush1.msra.mxu0 0.0
      %341 = vmatprep.subr.mxu0 0.0
      %342 = vmatpush1.msra.mxu0 0.0
      %343 = vmatprep.subr.mxu0 0.0
      %344 = vmatpush1.msra.mxu0 0.0
      %345 = vmatprep.subr.mxu0 0.0
      %346 = vmatpush1.msra.mxu0 0.0
      %347 = vmatprep.subr.mxu0 0.0
      %348 = vmatpush1.msra.mxu0 0.0
      %349 = vmatprep.subr.mxu0 0.0
      %350 = vmatpush1.msra.mxu0 0.0
      %351 = vmatprep.subr.mxu0 0.0
      %352 = vmatpush1.msra.mxu0 0.0
      %353 = vmatprep.subr.mxu0 0.0
      %354 = vmatpush1.msra.mxu0 0.0
      %355 = vmatprep.subr.mxu0 0.0
      %356 = vmatpush1.msra.mxu0 0.0
      %357 = vmatprep.subr.mxu0 0.0
      %358 = vmatpush1.msra.mxu0 0.0
      %359 = vmatprep.subr.mxu0 0.0
      %360 = vmatpush1.msra.mxu0 0.0
      %361 = vmatprep.subr.mxu0 0.0
      %362 = vmatpush1.msra.mxu0 0.0
      %363 = vmatprep.subr.mxu0 0.0
      %364 = vmatpush1.msra.mxu0 0.0
      %365 = vmatprep.subr.mxu0 0.0
      %366 = vmatpush1.msra.mxu0 0.0
      %367 = vmatprep.subr.mxu0 0.0
      %368 = vmatpush1.msra.mxu0 0.0
      %369 = vmatprep.subr.mxu0 0.0
      %370 = vmatpush1.msra.mxu0 0.0
      %371 = vmatprep.subr.mxu0 0.0
      %372 = vmatpush1.msra.mxu0 0.0
      %373 = vmatprep.subr.mxu0 0.0
      %374 = vmatpush1.msra.mxu0 0.0
      %375 = vmatprep.subr.mxu0 0.0
      %376 = vmatpush1.msra.mxu0 0.0
      %377 = vmatprep.subr.mxu0 0.0
      %378 = vmatpush1.msra.mxu0 0.0
      %379 = vmatprep.subr.mxu0 0.0
      %380 = vmatpush1.msra.mxu0 0.0
      %381 = vmatprep.subr.mxu0 0.0
      %382 = vmatpush1.msra.mxu0 0.0
      %383 = vmatprep.subr.mxu0 0.0
      %384 = vmatpush1.msra.mxu0 0.0
      %385 = vmatprep.subr.mxu0 0.0
      %386 = vmatpush1.msra.mxu0 0.0
      %387 = vmatprep.subr.mxu0 0.0
      %388 = vmatpush1.msra.mxu0 0.0
      %389 = vmatprep.subr.mxu0 0.0
      %390 = vmatpush1.msra.mxu0 0.0
      %391 = vmatprep.subr.mxu0 0.0
      %392 = vmatpush1.msra.mxu0 0.0
      %393 = vmatprep.subr.mxu0 0.0
      %394 = vmatpush1.msra.mxu0 0.0
      %395 = vmatprep.mubr.f32.mxu0 0.0
      %396 = vmatmul.mubr.f32.gmra.mrb[0].mxu0 %v329
      %v397 = vpop.f32.mrb[0].mxu0
      %v398 = vadd.f32 %v326, %v397
      %v399 = vpop.f32.mrb[0].mxu0
      %400 = vdwg.mxu0
      %v401 = vadd.f32 %v398, 3.0
      %v402 = vmax.f32 %v401, 0.0
      %v403 = vmin.f32 %v402, 6.0
      %v404 = vmul.f32 %v398, %v403
      %v405 = vmul.f32 %v404, 0.16666667
      %v406 = vlaneseq
      %v407 = vshrl.u32 %v406, 7
      %v408 = vsub.s32 0, %v407
      %v409 = vrot.slane %v405, %v408
      %411 = vbcast.lane.b32.xlu0 %v409, 256
      %v412 = vpop.permute.xlu0 %411
      %v415 = vunpack.c.l.s4 839922192
      %v416 = vunpack.c.0.s8 %v415
      %v417 = vlaneseq
      %v418 = vshrl.u32 %v417, 7
      %v419 = vsub.s32 %v416, %v418
      %v420 = vrot.slane %v412, %v419
      %v422 = vmul.f32 %v225, %v420
      %423 = vst [vmem:[%s224] sm:$0xff] %v422
      %p424 = scmp.lt.s32.totalorder %s16, 1
      %s425 = scalar_select %p424, %s16, 1
      %s426 = smul.addr %s425, 2
      %s427 = smul.addr %s426, 4
      %s428 = scalar_lea.vmem %s5, %s427
      // Predicated region
      $region41: #{squeeze_excitation.1} parent=39 // pred_check
        %p429 = pneg %p144
      $region42: #{squeeze_excitation.1} parent=39 // pred_check_branch
        %431 = sbr.rel (%p429) target = $region44
      $region43: #{squeeze_excitation.1} parent=39 // pred_region
        _
      $region44: #{squeeze_excitation.1} parent=39 // pred_fallthru
        _
    $region40: #{squeeze_excitation.1} parent=5 // pred_fallthru
      _
    %p432 = scmp.le.s32.totalorder 2, %s11
    // Predicated region
    $region45: #{squeeze_excitation.1} parent=5 // pred_check
      %p433 = pneg %p432
    $region46: #{squeeze_excitation.1} parent=5 // pred_check_branch
      %435 = sbr.rel (%p433) target = $region48
    $region47: #{squeeze_excitation.1} parent=5 // pred_region
      %s436 = ssub.s32 %s11, 2
      // Predicated region
      $region49: #{squeeze_excitation.1} parent=47 // pred_check
        %p437 = pneg %p150
      $region50: #{squeeze_excitation.1} parent=47 // pred_check_branch
        %439 = sbr.rel (%p437) target = $region52
      $region51: #{squeeze_excitation.1} parent=47 // pred_region
        %p440 = scmp.lt.s32.totalorder %s17, 1
        %s441 = scalar_select %p440, %s17, 1
        %s442 = smul.addr %s441, 2
        %s443 = smul.addr %s442, 4
        %s444 = scalar_lea.vmem %s5, %s443
      $region52: #{squeeze_excitation.1} parent=47 // pred_fallthru
        _
    $region48: #{squeeze_excitation.1} parent=5 // pred_fallthru
      _
  $region6: #{squeeze_excitation.1} parent=0 // loop_footer
    %s15 = sadd.s32 1, %s11
  $region7: #{squeeze_excitation.1} parent=0 // loop_footer_branch
    %10 = sbr.rel target = $region3
  $region8: #{squeeze_excitation.1} parent=0 // loop_exit
    _

</llo_original>
